<compile_context>
chip_gen: v5e
topology: v5e:2x2
jax: 0.10.0
libtpu: 0.0.40
codegen_flags: <defaults>
</compile_context>

<pallas_src>
import functools
import math

import jax
import jax.numpy as jnp
from jax import lax
from jax.experimental import pallas as pl
from jax.experimental.pallas import tpu as pltpu

PI = math.pi
INV_PI = 1.0 / math.pi


def _vdiffusion_kernel(alphas_ref, betas_ref,                      # scalar prefetch (SMEM)
                       phase_ref, mag_ref, noise_ref, bias_ref,    # streamed / per-batch
                       w1x_ref, w1m_ref, w2_ref, b2_ref,           # resident weights
                       out_ref,                                    # per-(batch,segment) SSE
                       acc_ref,                                    # VMEM f32 [C, Tt] scratch
                       *, t_valid: int, need_mask: bool):
    i = pl.program_id(0)            # batch          ("parallel")
    s = pl.program_id(1)            # time segment   ("parallel")
    j = pl.program_id(2)            # time tile      ("arbitrary" = reduction axis)
    n_tj = pl.num_programs(2)
    t_tile = phase_ref.shape[2]

    @pl.when(j == 0)
    def _():
        acc_ref[...] = jnp.zeros_like(acc_ref)

    alpha = alphas_ref[i]
    beta = betas_ref[i]
    alpha_over_pi = alpha * INV_PI          # folds x = phase/pi into the scalars
    beta_over_pi = beta * INV_PI

    ph = phase_ref[0]                               # [C, Tt] f32
    m_bf = mag_ref[0].astype(jnp.bfloat16)          # bf16 matmul operand only
    noise = noise_ref[0].astype(jnp.float32)        # streamed bf16 noise -> f32

    # ---- v-diffusion noising (f32 VPU; /pi folded into the prefetched scalars) ----
    x_noisy = alpha_over_pi * ph + beta * noise
    v_target = alpha * noise - beta_over_pi * ph

    # ---- simplified conditional denoiser: two accumulating MXU dots (no concat) ----
    h = (jnp.dot(w1x_ref[...], x_noisy.astype(jnp.bfloat16),
                 preferred_element_type=jnp.float32)
         + jnp.dot(w1m_ref[...], m_bf, preferred_element_type=jnp.float32)
         + bias_ref[0])                                            # +(b1 + temb), [H, Tt]
    a = jax.nn.silu(h.astype(jnp.bfloat16))                        # bf16 EUP (v6e/v7x)
    v_pred = (jnp.dot(w2_ref[...], a, preferred_element_type=jnp.float32)
              + b2_ref[...])                                       # [C, Tt] f32

    # ---- pure-VPU partial SSE accumulation (no per-step XLU reduce / output RMW) ----
    diff = v_pred - v_target
    d2 = diff * diff
    if need_mask:
        col = ((s * n_tj + j) * t_tile
               + lax.broadcasted_iota(jnp.int32, d2.shape, 1))
        d2 = jnp.where(col < t_valid, d2, 0.0)      # zero out padded time columns
    acc_ref[...] += d2

    # ---- one lane reduce + lane-dense store per (batch, segment) ----
    @pl.when(j == n_tj - 1)
    def _():
        part = jnp.sum(acc_ref[...], axis=1, keepdims=True)        # [C, 1]
        out_ref[...] = jnp.broadcast_to(part[None, None], out_ref.shape)


class DiffusionVocoder1d:
    """JAX/Pallas re-implementation of the DiffusionVocoder1d forward pass."""

    def __init__(self, in_channels: int, stft_num_fft: int,
                 hidden: int = 128, emb_dim: int = 16, seed: int = 0):
        self.in_channels = in_channels
        self.frequency_channels = stft_num_fft // 2 + 1
        C = in_channels * self.frequency_channels
        self.C, self.H, self.E = C, hidden, emb_dim

        # deterministic synthetic parameters (no checkpoint load)
        ks = jax.random.split(jax.random.PRNGKey(seed), 4)
        scale1 = 1.0 / math.sqrt(2 * C)
        # first layer split into two resident halves (x-branch / magnitude-branch)
        self.w1x = (jax.random.normal(ks[0], (hidden, C), jnp.float32)
                    * scale1).astype(jnp.bfloat16)
        self.w1m = (jax.random.normal(ks[1], (hidden, C), jnp.float32)
                    * scale1).astype(jnp.bfloat16)
        self.w2 = (jax.random.normal(ks[2], (C, hidden), jnp.float32)
                   / math.sqrt(hidden)).astype(jnp.bfloat16)
        self.b1 = jnp.zeros((1, hidden), jnp.float32)
        self.b2 = jnp.zeros((C, 1), jnp.float32)
        self.wt = (jax.random.normal(ks[3], (emb_dim, hidden), jnp.float32)
                   / math.sqrt(emb_dim))
        self.freqs = jnp.exp(jnp.linspace(0.0, math.log(1000.0), emb_dim // 2))

    # ---------------------------------------------------------------- helpers
    def _time_embed(self, sigmas):
        # sinusoidal sigma features -> linear projection (tiny glue, plain JAX)
        ang = sigmas[:, None] * self.freqs[None, :]
        feats = jnp.concatenate([jnp.sin(ang), jnp.cos(ang)], axis=-1)   # [b, E]
        return feats @ self.wt                                           # [b, H]

    @staticmethod
    def _hw_vmem_bytes():
        try:
            return int(pltpu.get_tpu_info().vmem_capacity_bytes)
        except Exception:
            return 64 * 1024 * 1024          # conservative default (v7x per-TC)

    def _choose_tiling(self, t):
        """Pad t to a 128-multiple and pick the largest t_tile that fits VMEM."""
        C, H = self.C, self.H
        vmem = self._hw_vmem_bytes()
        budget = vmem // 3                   # headroom for double-buffering / spills
        t_pad = ((t + 127) // 128) * 128
        t_tile = 128
        for cand in (2048, 1024, 512, 256, 128):
            if t_pad % cand:
                continue
            # rough per-tile VMEM estimate:
            #   double-buffered streams: phase f32 + mag f32 + noise bf16
            #   f32 intermediates: noise, x_noisy, v_target, v_pred, diff^2, acc
            #   hidden activations: h (f32) + silu (bf16)
            est = cand * (2 * C * (4 + 4 + 2) + 6 * C * 4 + H * (4 + 2))
            if est <= budget:
                t_tile = cand
                break
        vmem_limit = int(min(100 * 1024 * 1024, max(32 * 1024 * 1024, vmem * 3 // 4)))
        return t_pad, t_tile, vmem_limit

    # ------------------------------------------------------------------ forward
    def __call__(self, magnitude, phase, rng):
        b, c, f, t = magnitude.shape
        C, H = self.C, self.H
        assert c * f == C

        # 'b c f t -> b (c f) t' is a free reshape: no transpose, no /pi pass.
        # Stream f32 (no standalone XLA cast pass); bf16 casts happen in-kernel
        # only on the matmul operands.
        mag = magnitude.reshape(b, C, t)
        ph = phase.reshape(b, C, t)

        # diffusion randomness: tiny per-batch scalars + one pre-generated bf16
        # noise tensor (streamed; replaces in-kernel Box-Muller, works in interpret).
        k_sig, k_noise = jax.random.split(rng)
        sigmas = jax.random.uniform(k_sig, (b,), jnp.float32)
        angles = sigmas * (PI / 2)
        alphas, betas = jnp.cos(angles), jnp.sin(angles)
        # fuse b1 + sigma embedding into one per-batch [H, 1] bias
        bias1 = (self._time_embed(sigmas) + self.b1).reshape(b, H, 1).astype(jnp.float32)
        noise = jax.random.normal(k_noise, (b, C, t), jnp.bfloat16)

        t_pad, t_tile, vmem_limit = self._choose_tiling(t)
        pad = t_pad - t
        if pad:
            padw = ((0, 0), (0, 0), (0, pad))
            mag = jnp.pad(mag, padw)
            ph = jnp.pad(ph, padw)
            noise = jnp.pad(noise, padw)

        n_t = t_pad // t_tile
        if n_t >= 2 and n_t % 2 == 0:
            n_seg, n_tj = 2, n_t // 2        # second "parallel" axis: both v7x TCs at b=1
        else:
            n_seg, n_tj = 1, n_t

        kernel = functools.partial(_vdiffusion_kernel,
                                   t_valid=t, need_mask=(pad > 0))

        grid_spec = pltpu.PrefetchScalarGridSpec(
            num_scalar_prefetch=2,           # alphas, betas -> SMEM
            grid=(b, n_seg, n_tj),
            in_specs=[
                pl.BlockSpec((1, C, t_tile), lambda i, s, j, *_: (i, 0, s * n_tj + j)),  # phase
                pl.BlockSpec((1, C, t_tile), lambda i, s, j, *_: (i, 0, s * n_tj + j)),  # magnitude
                pl.BlockSpec((1, C, t_tile), lambda i, s, j, *_: (i, 0, s * n_tj + j)),  # noise
                pl.BlockSpec((1, H, 1), lambda i, s, j, *_: (i, 0, 0)),                  # b1 + temb
                pl.BlockSpec((H, C), lambda i, s, j, *_: (0, 0)),                        # w1 (x half)
                pl.BlockSpec((H, C), lambda i, s, j, *_: (0, 0)),                        # w1 (mag half)
                pl.BlockSpec((C, H), lambda i, s, j, *_: (0, 0)),                        # w2
                pl.BlockSpec((C, 1), lambda i, s, j, *_: (0, 0)),                        # b2
            ],
            # per-(batch, segment) lane-padded partial SSE, resident across j,
            # written once on the last time tile (no per-step RMW).
            out_specs=pl.BlockSpec((1, 1, C, 128), lambda i, s, j, *_: (i, s, 0, 0)),
            scratch_shapes=[pltpu.VMEM((C, t_tile), jnp.float32)],   # diff^2 accumulator
        )

        partial_sse = pl.pallas_call(
            kernel,
            grid_spec=grid_spec,
            out_shape=jax.ShapeDtypeStruct((b, n_seg, C, 128), jnp.float32),
            compiler_params=pltpu.CompilerParams(
                # batch & time-segment "parallel" -> shard over v7x's two TCs;
                # innermost time-tile axis carries the accumulator -> "arbitrary".
                dimension_semantics=("parallel", "parallel", "arbitrary"),
                vmem_limit_bytes=vmem_limit,
            ),
        )(alphas, betas, ph, mag, noise, bias1,
          self.w1x, self.w1m, self.w2, self.b2)

        # every lane of an output block holds the same per-(batch,channel) sum;
        # the tiny final reduce + mean are cheapest in plain JAX.
        denom = jnp.float32(b * t * C)       # true (unpadded) element count
        return partial_sse[:, :, :, 0].sum() / denom


if __name__ == "__main__":
    key = jax.random.PRNGKey(0)
    b, c, num_fft, t = 2, 2, 14, 16
    f = num_fft // 2 + 1                     # frequency_channels = 8 -> C = 16

    k_mag, k_phase, k_diff = jax.random.split(key, 3)
    magnitude = jax.random.uniform(k_mag, (b, c, f, t), jnp.float32)
    phase = jax.random.uniform(k_phase, (b, c, f, t), jnp.float32,
                               minval=-PI, maxval=PI)

    model = DiffusionVocoder1d(in_channels=c, stft_num_fft=num_fft)
    loss = model(magnitude, phase, k_diff)
    loss = jax.block_until_ready(loss)
    assert loss.shape == () and bool(jnp.isfinite(loss))
    print("KERNEL_OK")
</pallas_src>

<mosaic_0001>
module attributes {stable_mosaic.version = 11 : i64} {
  func.func @_vdiffusion_kernel(%arg0: i32, %arg1: i32, %arg2: i32, %arg3: memref<2xf32, #tpu.memory_space<smem>>, %arg4: memref<2xf32, #tpu.memory_space<smem>>, %arg5: memref<1x16x128xf32, #tpu.memory_space<vmem>>, %arg6: memref<1x16x128xf32, #tpu.memory_space<vmem>>, %arg7: memref<1x16x128xbf16, #tpu.memory_space<vmem>>, %arg8: memref<1x128x1xf32, #tpu.memory_space<vmem>>, %arg9: memref<128x16xbf16, #tpu.memory_space<vmem>>, %arg10: memref<128x16xbf16, #tpu.memory_space<vmem>>, %arg11: memref<16x128xbf16, #tpu.memory_space<vmem>>, %arg12: memref<16x1xf32, #tpu.memory_space<vmem>>, %arg13: memref<1x1x16x128xf32, #tpu.memory_space<vmem>>, %arg14: memref<16x128xf32, #tpu.memory_space<vmem>>) attributes {dimension_semantics = [#tpu.dimension_semantics<parallel>, #tpu.dimension_semantics<parallel>, #tpu.dimension_semantics<arbitrary>], iteration_bounds = array<i64: 2, 1, 1>, scalar_prefetch = 2 : i64, scratch_operands = 1 : i64, tpu.core_type = #tpu.core_type<tc>, window_params = [{transform_indices = @transform_0, window_bounds = array<i64: 1, 16, 128>}, {transform_indices = @transform_1, window_bounds = array<i64: 1, 16, 128>}, {transform_indices = @transform_2, window_bounds = array<i64: 1, 16, 128>}, {transform_indices = @transform_3, window_bounds = array<i64: 1, 128, 1>}, {pipeline_mode = #tpu.pipeline_mode<synchronous>, transform_indices = @transform_4, window_bounds = array<i64: 128, 16>}, {pipeline_mode = #tpu.pipeline_mode<synchronous>, transform_indices = @transform_5, window_bounds = array<i64: 128, 16>}, {pipeline_mode = #tpu.pipeline_mode<synchronous>, transform_indices = @transform_6, window_bounds = array<i64: 16, 128>}, {pipeline_mode = #tpu.pipeline_mode<synchronous>, transform_indices = @transform_7, window_bounds = array<i64: 16, 1>}, {transform_indices = @transform_8, window_bounds = array<i64: 1, 1, 16, 128>}]} {
    %c0_i32 = arith.constant 0 : i32
    %0 = arith.cmpi eq, %arg2, %c0_i32 : i32
    %1 = arith.extui %0 : i1 to i32
    %c0_i32_0 = arith.constant 0 : i32
    %2 = arith.cmpi ne, %1, %c0_i32_0 : i32
    scf.if %2 {
      %cst_32 = arith.constant 0.000000e+00 : f32
      %67 = vector.broadcast %cst_32 : f32 to vector<16x128xf32>
      %c0_33 = arith.constant 0 : index
      %c0_34 = arith.constant 0 : index
      %68 = vector.load %arg14[%c0_33, %c0_34] : memref<16x128xf32, #tpu.memory_space<vmem>>, vector<16x128xf32>
      tpu.vector_store %arg14[%c0_33, %c0_34], %67 {strides = array<i32>} : memref<16x128xf32, #tpu.memory_space<vmem>>, vector<16x128xf32>,
    } else {
    }
    %3 = arith.index_cast %arg0 : i32 to index
    %4 = memref.load %arg3[%3] : memref<2xf32, #tpu.memory_space<smem>>
    %5 = arith.index_cast %arg0 : i32 to index
    %6 = memref.load %arg4[%5] : memref<2xf32, #tpu.memory_space<smem>>
    %cst = arith.constant 0.318309873 : f32
    %7 = arith.mulf %4, %cst : f32
    %cst_1 = arith.constant 0.318309873 : f32
    %8 = arith.mulf %6, %cst_1 : f32
    %c0 = arith.constant 0 : index
    %c0_2 = arith.constant 0 : index
    %c0_3 = arith.constant 0 : index
    %9 = vector.load %arg5[%c0, %c0_2, %c0_3] : memref<1x16x128xf32, #tpu.memory_space<vmem>>, vector<1x16x128xf32>
    %10 = vector.shape_cast %9 : vector<1x16x128xf32> to vector<16x128xf32>
    %c0_4 = arith.constant 0 : index
    %c0_5 = arith.constant 0 : index
    %c0_6 = arith.constant 0 : index
    %11 = vector.load %arg6[%c0_4, %c0_5, %c0_6] : memref<1x16x128xf32, #tpu.memory_space<vmem>>, vector<1x16x128xf32>
    %12 = vector.shape_cast %11 : vector<1x16x128xf32> to vector<16x128xf32>
    %13 = arith.truncf %12 : vector<16x128xf32> to vector<16x128xbf16>
    %c0_7 = arith.constant 0 : index
    %c0_8 = arith.constant 0 : index
    %c0_9 = arith.constant 0 : index
    %14 = vector.load %arg7[%c0_7, %c0_8, %c0_9] : memref<1x16x128xbf16, #tpu.memory_space<vmem>>, vector<1x16x128xbf16>
    %15 = vector.shape_cast %14 : vector<1x16x128xbf16> to vector<16x128xbf16>
    %16 = arith.extf %15 : vector<16x128xbf16> to vector<16x128xf32>
    %17 = vector.broadcast %7 : f32 to vector<16x128xf32>
    %18 = arith.mulf %17, %10 : vector<16x128xf32>
    %19 = vector.broadcast %6 : f32 to vector<16x128xf32>
    %20 = arith.mulf %19, %16 : vector<16x128xf32>
    %21 = arith.addf %18, %20 : vector<16x128xf32>
    %22 = vector.broadcast %4 : f32 to vector<16x128xf32>
    %23 = arith.mulf %22, %16 : vector<16x128xf32>
    %24 = vector.broadcast %8 : f32 to vector<16x128xf32>
    %25 = arith.mulf %24, %10 : vector<16x128xf32>
    %26 = arith.subf %23, %25 : vector<16x128xf32>
    %c0_10 = arith.constant 0 : index
    %c0_11 = arith.constant 0 : index
    %27 = vector.load %arg9[%c0_10, %c0_11] : memref<128x16xbf16, #tpu.memory_space<vmem>>, vector<128x16xbf16>
    %28 = arith.truncf %21 : vector<16x128xf32> to vector<16x128xbf16>
    %cst_12 = arith.constant dense<0.000000e+00> : vector<128x128xf32>
    %29 = tpu.matmul %27, %28, %cst_12 {dimension_numbers = #tpu.dot_dimension_numbers<[1], [0], [0], [1], [0, 0, 1, 1], [], []>} : vector<128x16xbf16>, vector<16x128xbf16>, vector<128x128xf32> -> vector<128x128xf32>
    %c0_13 = arith.constant 0 : index
    %c0_14 = arith.constant 0 : index
    %30 = vector.load %arg10[%c0_13, %c0_14] : memref<128x16xbf16, #tpu.memory_space<vmem>>, vector<128x16xbf16>
    %cst_15 = arith.constant dense<0.000000e+00> : vector<128x128xf32>
    %31 = tpu.matmul %30, %13, %cst_15 {dimension_numbers = #tpu.dot_dimension_numbers<[1], [0], [0], [1], [0, 0, 1, 1], [], []>} : vector<128x16xbf16>, vector<16x128xbf16>, vector<128x128xf32> -> vector<128x128xf32>
    %32 = arith.addf %29, %31 : vector<128x128xf32>
    %c0_16 = arith.constant 0 : index
    %c0_17 = arith.constant 0 : index
    %c0_18 = arith.constant 0 : index
    %33 = vector.load %arg8[%c0_16, %c0_17, %c0_18] : memref<1x128x1xf32, #tpu.memory_space<vmem>>, vector<1x128x1xf32>
    %34 = vector.shape_cast %33 : vector<1x128x1xf32> to vector<128x1xf32>
    %35 = vector.broadcast %34 : vector<128x1xf32> to vector<128x128xf32>
    %36 = arith.addf %32, %35 : vector<128x128xf32>
    %37 = arith.truncf %36 : vector<128x128xf32> to vector<128x128xbf16>
    %38 = arith.negf %37 : vector<128x128xbf16>
    %39 = math.exp %38 : vector<128x128xbf16>
    %cst_19 = arith.constant 1.000000e+00 : bf16
    %40 = vector.broadcast %cst_19 : bf16 to vector<128x128xbf16>
    %41 = arith.addf %40, %39 : vector<128x128xbf16>
    %42 = arith.divf %40, %41 : vector<128x128xbf16>
    %43 = arith.mulf %37, %42 : vector<128x128xbf16>
    %c0_20 = arith.constant 0 : index
    %c0_21 = arith.constant 0 : index
    %44 = vector.load %arg11[%c0_20, %c0_21] : memref<16x128xbf16, #tpu.memory_space<vmem>>, vector<16x128xbf16>
    %cst_22 = arith.constant dense<0.000000e+00> : vector<16x128xf32>
    %45 = tpu.matmul %44, %43, %cst_22 {dimension_numbers = #tpu.dot_dimension_numbers<[1], [0], [0], [1], [0, 0, 1, 1], [], []>} : vector<16x128xbf16>, vector<128x128xbf16>, vector<16x128xf32> -> vector<16x128xf32>
    %c0_23 = arith.constant 0 : index
    %c0_24 = arith.constant 0 : index
    %46 = vector.load %arg12[%c0_23, %c0_24] : memref<16x1xf32, #tpu.memory_space<vmem>>, vector<16x1xf32>
    %47 = vector.broadcast %46 : vector<16x1xf32> to vector<16x128xf32>
    %48 = arith.addf %45, %47 : vector<16x128xf32>
    %49 = arith.subf %48, %26 : vector<16x128xf32>
    %50 = arith.mulf %49, %49 : vector<16x128xf32>
    %c1_i32 = arith.constant 1 : i32
    %51 = arith.muli %arg1, %c1_i32 : i32
    %52 = arith.addi %51, %arg2 : i32
    %c128_i32 = arith.constant 128 : i32
    %53 = arith.muli %52, %c128_i32 : i32
    %54 = tpu.iota {dimensions = array<i32: 1>} : vector<16x128xi32>
    %55 = vector.broadcast %53 : i32 to vector<16x128xi32>
    %56 = arith.addi %55, %54 : vector<16x128xi32>
    %c16_i32 = arith.constant 16 : i32
    %57 = vector.broadcast %c16_i32 : i32 to vector<16x128xi32>
    %58 = arith.cmpi slt, %56, %57 : vector<16x128xi32>
    %cst_25 = arith.constant 0.000000e+00 : f32
    %59 = vector.broadcast %cst_25 : f32 to vector<16x128xf32>
    %60 = arith.select %58, %50, %59 : vector<16x128xi1>, vector<16x128xf32>
    %c0_26 = arith.constant 0 : index
    %c0_27 = arith.constant 0 : index
    %61 = vector.load %arg14[%c0_26, %c0_27] : memref<16x128xf32, #tpu.memory_space<vmem>>, vector<16x128xf32>
    %62 = arith.addf %61, %60 : vector<16x128xf32>
    %c0_28 = arith.constant 0 : index
    %c0_29 = arith.constant 0 : index
    %63 = vector.load %arg14[%c0_28, %c0_29] : memref<16x128xf32, #tpu.memory_space<vmem>>, vector<16x128xf32>
    tpu.vector_store %arg14[%c0_28, %c0_29], %62 {strides = array<i32>} : memref<16x128xf32, #tpu.memory_space<vmem>>, vector<16x128xf32>,
    %c0_i32_30 = arith.constant 0 : i32
    %64 = arith.cmpi eq, %arg2, %c0_i32_30 : i32
    %65 = arith.extui %64 : i1 to i32
    %c0_i32_31 = arith.constant 0 : i32
    %66 = arith.cmpi ne, %65, %c0_i32_31 : i32
    scf.if %66 {
      %c0_32 = arith.constant 0 : index
      %c0_33 = arith.constant 0 : index
      %67 = vector.load %arg14[%c0_32, %c0_33] : memref<16x128xf32, #tpu.memory_space<vmem>>, vector<16x128xf32>
      %cst_34 = arith.constant dense<0.000000e+00> : vector<16xf32>
      %68 = vector.multi_reduction <add>, %67, %cst_34 [1] : vector<16x128xf32> to vector<16xf32>
      %69 = vector.shape_cast %68 : vector<16xf32> to vector<16x1xf32>
      %70 = vector.shape_cast %69 : vector<16x1xf32> to vector<1x1x16x1xf32>
      %71 = vector.shape_cast %70 : vector<1x1x16x1xf32> to vector<1x1x16x1xf32>
      %72 = vector.broadcast %71 : vector<1x1x16x1xf32> to vector<1x1x16x128xf32>
      %c0_35 = arith.constant 0 : index
      %c0_36 = arith.constant 0 : index
      %c0_37 = arith.constant 0 : index
      %c0_38 = arith.constant 0 : index
      %73 = vector.load %arg13[%c0_35, %c0_36, %c0_37, %c0_38] : memref<1x1x16x128xf32, #tpu.memory_space<vmem>>, vector<1x1x16x128xf32>
      tpu.vector_store %arg13[%c0_35, %c0_36, %c0_37, %c0_38], %72 {strides = array<i32>} : memref<1x1x16x128xf32, #tpu.memory_space<vmem>>, vector<1x1x16x128xf32>,
    } else {
    }
    return
  }
  func.func @transform_0(%arg0: i32, %arg1: i32, %arg2: i32, %arg3: memref<2xf32, #tpu.memory_space<smem>>, %arg4: memref<2xf32, #tpu.memory_space<smem>>) -> (i32, i32, i32) {
    %c1_i32 = arith.constant 1 : i32
    %0 = arith.muli %arg1, %c1_i32 : i32
    %1 = arith.addi %0, %arg2 : i32
    %c0_i32 = arith.constant 0 : i32
    %c0_i32_0 = arith.constant 0 : i32
    return %arg0, %c0_i32, %1 : i32, i32, i32
  }
  func.func @transform_1(%arg0: i32, %arg1: i32, %arg2: i32, %arg3: memref<2xf32, #tpu.memory_space<smem>>, %arg4: memref<2xf32, #tpu.memory_space<smem>>) -> (i32, i32, i32) {
    %c1_i32 = arith.constant 1 : i32
    %0 = arith.muli %arg1, %c1_i32 : i32
    %1 = arith.addi %0, %arg2 : i32
    %c0_i32 = arith.constant 0 : i32
    %c0_i32_0 = arith.constant 0 : i32
    return %arg0, %c0_i32, %1 : i32, i32, i32
  }
  func.func @transform_2(%arg0: i32, %arg1: i32, %arg2: i32, %arg3: memref<2xf32, #tpu.memory_space<smem>>, %arg4: memref<2xf32, #tpu.memory_space<smem>>) -> (i32, i32, i32) {
    %c1_i32 = arith.constant 1 : i32
    %0 = arith.muli %arg1, %c1_i32 : i32
    %1 = arith.addi %0, %arg2 : i32
    %c0_i32 = arith.constant 0 : i32
    %c0_i32_0 = arith.constant 0 : i32
    return %arg0, %c0_i32, %1 : i32, i32, i32
  }
  func.func @transform_3(%arg0: i32, %arg1: i32, %arg2: i32, %arg3: memref<2xf32, #tpu.memory_space<smem>>, %arg4: memref<2xf32, #tpu.memory_space<smem>>) -> (i32, i32, i32) {
    %c0_i32 = arith.constant 0 : i32
    %c0_i32_0 = arith.constant 0 : i32
    %c0_i32_1 = arith.constant 0 : i32
    return %arg0, %c0_i32, %c0_i32_0 : i32, i32, i32
  }
  func.func @transform_4(%arg0: i32, %arg1: i32, %arg2: i32, %arg3: memref<2xf32, #tpu.memory_space<smem>>, %arg4: memref<2xf32, #tpu.memory_space<smem>>) -> (i32, i32) {
    %c0_i32 = arith.constant 0 : i32
    %c0_i32_0 = arith.constant 0 : i32
    %c0_i32_1 = arith.constant 0 : i32
    return %c0_i32, %c0_i32_0 : i32, i32
  }
  func.func @transform_5(%arg0: i32, %arg1: i32, %arg2: i32, %arg3: memref<2xf32, #tpu.memory_space<smem>>, %arg4: memref<2xf32, #tpu.memory_space<smem>>) -> (i32, i32) {
    %c0_i32 = arith.constant 0 : i32
    %c0_i32_0 = arith.constant 0 : i32
    %c0_i32_1 = arith.constant 0 : i32
    return %c0_i32, %c0_i32_0 : i32, i32
  }
  func.func @transform_6(%arg0: i32, %arg1: i32, %arg2: i32, %arg3: memref<2xf32, #tpu.memory_space<smem>>, %arg4: memref<2xf32, #tpu.memory_space<smem>>) -> (i32, i32) {
    %c0_i32 = arith.constant 0 : i32
    %c0_i32_0 = arith.constant 0 : i32
    %c0_i32_1 = arith.constant 0 : i32
    return %c0_i32, %c0_i32_0 : i32, i32
  }
  func.func @transform_7(%arg0: i32, %arg1: i32, %arg2: i32, %arg3: memref<2xf32, #tpu.memory_space<smem>>, %arg4: memref<2xf32, #tpu.memory_space<smem>>) -> (i32, i32) {
    %c0_i32 = arith.constant 0 : i32
    %c0_i32_0 = arith.constant 0 : i32
    %c0_i32_1 = arith.constant 0 : i32
    return %c0_i32, %c0_i32_0 : i32, i32
  }
  func.func @transform_8(%arg0: i32, %arg1: i32, %arg2: i32, %arg3: memref<2xf32, #tpu.memory_space<smem>>, %arg4: memref<2xf32, #tpu.memory_space<smem>>) -> (i32, i32, i32, i32) {
    %c0_i32 = arith.constant 0 : i32
    %c0_i32_0 = arith.constant 0 : i32
    %c0_i32_1 = arith.constant 0 : i32
    return %arg0, %arg1, %c0_i32, %c0_i32_0 : i32, i32, i32, i32
  }
}

</mosaic_0001>

<llo_original>
// kernel: tpu_custom_call.1
$region0: #{tpu_custom_call.1}
  #allocation0 [shape = 'u32[]', space=smem, size = 0x4, offset = 0x4, fixed_abs, tag = 'smem constant byte address 0x4 - core index']
  #allocation1 [shape = 'u32[72,128]{1,0:T(1,128)}', space=vmem, size = 0x9000, scoped, tag = 'internal scratch']
  #allocation2 [shape = 'f32[16,128]{1,0:T(8,128)}', space=vmem, size = 0x2000, scoped, tag = 'scratch operand']
  #allocation3 [shape = 's32[1]{0}', space=sflag, size = 0x4, scoped, tag = 'scoped memory for tpu_custom_call.1']
  #allocation4 [shape = 'u8[512]{0}', space=smem, size = 0x200, scoped, tag = 'prefetched SMEM operand 0']
  #allocation5 [shape = 'u8[512]{0}', space=smem, size = 0x200, scoped, tag = 'prefetched SMEM operand 1']
  %s0 = inlined_call_operand.vmem [shape: f32[2], index: 0, kind: input, shape index: {}]
  %s1 = inlined_call_operand.vmem [shape: f32[2], index: 1, kind: input, shape index: {}]
  %s2 = inlined_call_operand.vmem [shape: f32[2,16,128], index: 2, kind: input, shape index: {}]
  %s3 = inlined_call_operand.vmem [shape: f32[2,16,128], index: 3, kind: input, shape index: {}]
  %s4 = inlined_call_operand.vmem [shape: bf16[2,16,128], index: 4, kind: input, shape index: {}]
  %s5 = inlined_call_operand.vmem [shape: f32[2,128,1], index: 5, kind: input, shape index: {}]
  %s6 = inlined_call_operand.vmem [shape: bf16[128,16], index: 6, kind: input, shape index: {}]
  %s7 = inlined_call_operand.vmem [shape: bf16[128,16], index: 7, kind: input, shape index: {}]
  %s8 = inlined_call_operand.vmem [shape: bf16[16,128], index: 8, kind: input, shape index: {}]
  %s9 = inlined_call_operand.vmem [shape: f32[16,1], index: 9, kind: input, shape index: {}]
  %s10 = inlined_call_operand.hbm [shape: f32[2,1,16,128], index: 10, kind: output, shape index: {}]
  %s11 = sld [smem:[#allocation0]]
  $region73: #{tpu_custom_call.1} parent=0
    _
  %s13 = ssub.s32 1, %s11
  %s14 = scalar_select 0, %s13, %s11
  %s16 = sshll.u32 %s0, 4
  %s17 = int_to_ptr.vmem [resolvable:$true] %s16
  %19 = dma.vmem_to_smem %s17, 16, [#allocation4], [#allocation3]
  %s21 = sshll.u32 %s1, 4
  %s22 = int_to_ptr.vmem [resolvable:$true] %s21
  %24 = dma.vmem_to_smem %s22, 16, [#allocation5], [#allocation3]
  %26 = dma.done [#allocation3], 32
  %27 = sfence
  $region1: #{tpu_custom_call.1} parent=0
    #allocation6 [shape = 'u8[16384]{0}', space=vmem, size = 0x4000, scoped, tag = 'output window, operand 0']
    #allocation7 [shape = 's32[2]{0}', space=sflag, size = 0x8, scoped, tag = 'scoped memory for tpu_custom_call.1']
    %28 = vsyncpa [#allocation7], 0
    %s29 = scalar_lea.sflag [#allocation7], 1
    %30 = vsyncpa %s29, 0
    loop: start=0, step=1, limit=4
    $region2: #{tpu_custom_call.1} parent=1 // loop_pre_header
      _
    $region3: #{tpu_custom_call.1} parent=1 // loop_header
      %s32 = sphi 0, %s36
      %p33 = scmp.ge.s32.totalorder %s32, 4
      %s39 = sphi 0, %s58
      %s40 = sphi 0, %s54
      %s41 = sphi 0, %s50
      %s42 = sphi 0, %s39
      %s43 = sphi 0, %s40
      %s44 = sphi 0, %s41
      %s45 = sphi 0, %s42
      %s46 = sphi 0, %s43
      %s47 = sphi 0, %s44
      %s65 = sphi 0, %s67
      %s68 = sphi 0, %s65
      %s69 = sphi 0, %s68
      %s85 = sphi 0, %s69
      %s95 = sphi 0, %s97
      %s98 = sphi 0, %s95
      %s99 = sphi 0, %s98
      %s115 = sphi 0, %s99
      %s125 = sphi 0, %s127
      %s128 = sphi 0, %s125
      %s129 = sphi 0, %s128
      %s145 = sphi 0, %s129
      %s151 = sphi 0, %s153
      %s154 = sphi 0, %s151
      %s155 = sphi 0, %s154
      %s171 = sphi 0, %s155
      %s175 = sphi 0, %s175
      %s177 = sphi 0, %s175
      %s178 = sphi 0, %s177
      %s192 = sphi 0, %s178
      %s196 = sphi 0, %s196
      %s198 = sphi 0, %s196
      %s199 = sphi 0, %s198
      %s213 = sphi 0, %s199
      %s217 = sphi 0, %s217
      %s219 = sphi 0, %s217
      %s220 = sphi 0, %s219
      %s234 = sphi 0, %s220
      %s238 = sphi 0, %s238
      %s240 = sphi 0, %s238
      %s241 = sphi 0, %s240
      %s255 = sphi 0, %s241
      %s263 = sphi 0, %s265
      %s266 = sphi 0, %s263
      %s267 = sphi 0, %s266
      %s283 = sphi 0, %s267
    $region4: #{tpu_custom_call.1} parent=1 // loop_header_branch
      %35 = sbr.rel (%p33) target = $region8
    $region5: #{tpu_custom_call.1} parent=1 // loop_body
      %s37 = ssub.s32 %s32, 1
      %s38 = ssub.s32 %s32, 2
      %s48 = sadd.s32 1, %s41
      %p49 = scmp.ge.s32.totalorder %s48, 1
      %s50 = scalar_select %p49, 0, %s48
      %s51 = sadd.s32 1, %s40
      %s52 = scalar_select %p49, %s51, %s40
      %p53 = scmp.ge.s32.totalorder %s52, 1
      %s54 = scalar_select %p53, 0, %s52
      %s55 = sadd.s32 1, %s39
      %s56 = scalar_select %p53, %s55, %s39
      %p57 = scmp.ge.s32.totalorder %s56, 2
      %s58 = scalar_select %p57, 0, %s56
      %s59 = sadd.s32 %s40, %s41
      %s60 = sadd.s32 %s54, %s50
      %s61 = ssub.s32 %s39, %s58
      %s62 = ssub.s32 %s59, %s60
      %s63 = sor.u32 %s61, %s62
      %p64 = scmp.eq.s32.totalorder %s63, 0
      %s66 = sadd.s32 %s65, 1
      %s67 = scalar_select %p64, %s65, %s66
      %p70 = pneg %p64
      %p71 = scmp.eq.s32.totalorder %s32, 1
      %p72 = por %p70, %p71
      %p73 = scmp.ne.s32.totalorder %s65, %s68
      %p74 = scmp.eq.s32.totalorder %s32, 0
      %p75 = por %p73, %p74
      %p76 = scmp.ne.s32.totalorder %s65, %s68
      %p77 = scmp.eq.s32.totalorder %s37, 1
      %p78 = por %p76, %p77
      %p79 = scmp.ne.s32.totalorder %s68, %s69
      %p80 = scmp.eq.s32.totalorder %s37, 0
      %p81 = por %p79, %p80
      %p82 = scmp.ne.s32.totalorder %s68, %s69
      %p83 = scmp.eq.s32.totalorder %s38, 1
      %p84 = por %p82, %p83
      %p86 = scmp.ne.s32.totalorder %s69, %s85
      %p87 = scmp.eq.s32.totalorder %s38, 0
      %p88 = por %p86, %p87
      %s89 = sadd.s32 %s40, %s41
      %s90 = sadd.s32 %s54, %s50
      %s91 = ssub.s32 %s39, %s58
      %s92 = ssub.s32 %s89, %s90
      %s93 = sor.u32 %s91, %s92
      %p94 = scmp.eq.s32.totalorder %s93, 0
      %s96 = sadd.s32 %s95, 1
      %s97 = scalar_select %p94, %s95, %s96
      %p100 = pneg %p94
      %p101 = scmp.eq.s32.totalorder %s32, 1
      %p102 = por %p100, %p101
      %p103 = scmp.ne.s32.totalorder %s95, %s98
      %p104 = scmp.eq.s32.totalorder %s32, 0
      %p105 = por %p103, %p104
      %p106 = scmp.ne.s32.totalorder %s95, %s98
      %p107 = scmp.eq.s32.totalorder %s37, 1
      %p108 = por %p106, %p107
      %p109 = scmp.ne.s32.totalorder %s98, %s99
      %p110 = scmp.eq.s32.totalorder %s37, 0
      %p111 = por %p109, %p110
      %p112 = scmp.ne.s32.totalorder %s98, %s99
      %p113 = scmp.eq.s32.totalorder %s38, 1
      %p114 = por %p112, %p113
      %p116 = scmp.ne.s32.totalorder %s99, %s115
      %p117 = scmp.eq.s32.totalorder %s38, 0
      %p118 = por %p116, %p117
      %s119 = sadd.s32 %s40, %s41
      %s120 = sadd.s32 %s54, %s50
      %s121 = ssub.s32 %s39, %s58
      %s122 = ssub.s32 %s119, %s120
      %s123 = sor.u32 %s121, %s122
      %p124 = scmp.eq.s32.totalorder %s123, 0
      %s126 = sadd.s32 %s125, 1
      %s127 = scalar_select %p124, %s125, %s126
      %p130 = pneg %p124
      %p131 = scmp.eq.s32.totalorder %s32, 1
      %p132 = por %p130, %p131
      %p133 = scmp.ne.s32.totalorder %s125, %s128
      %p134 = scmp.eq.s32.totalorder %s32, 0
      %p135 = por %p133, %p134
      %p136 = scmp.ne.s32.totalorder %s125, %s128
      %p137 = scmp.eq.s32.totalorder %s37, 1
      %p138 = por %p136, %p137
      %p139 = scmp.ne.s32.totalorder %s128, %s129
      %p140 = scmp.eq.s32.totalorder %s37, 0
      %p141 = por %p139, %p140
      %p142 = scmp.ne.s32.totalorder %s128, %s129
      %p143 = scmp.eq.s32.totalorder %s38, 1
      %p144 = por %p142, %p143
      %p146 = scmp.ne.s32.totalorder %s129, %s145
      %p147 = scmp.eq.s32.totalorder %s38, 0
      %p148 = por %p146, %p147
      %s149 = ssub.s32 %s39, %s58
      %p150 = scmp.eq.s32.totalorder %s149, 0
      %s152 = sadd.s32 %s151, 1
      %s153 = scalar_select %p150, %s151, %s152
      %p156 = pneg %p150
      %p157 = scmp.eq.s32.totalorder %s32, 1
      %p158 = por %p156, %p157
      %p159 = scmp.ne.s32.totalorder %s151, %s154
      %p160 = scmp.eq.s32.totalorder %s32, 0
      %p161 = por %p159, %p160
      %p162 = scmp.ne.s32.totalorder %s151, %s154
      %p163 = scmp.eq.s32.totalorder %s37, 1
      %p164 = por %p162, %p163
      %p165 = scmp.ne.s32.totalorder %s154, %s155
      %p166 = scmp.eq.s32.totalorder %s37, 0
      %p167 = por %p165, %p166
      %p168 = scmp.ne.s32.totalorder %s154, %s155
      %p169 = scmp.eq.s32.totalorder %s38, 1
      %p170 = por %p168, %p169
      %p172 = scmp.ne.s32.totalorder %s155, %s171
      %p173 = scmp.eq.s32.totalorder %s38, 0
      %p174 = por %p172, %p173
      %s176 = sadd.s32 %s175, 1
      %p179 = scmp.eq.s32.totalorder %s32, 1
      %p180 = scmp.ne.s32.totalorder %s175, %s177
      %p181 = scmp.eq.s32.totalorder %s32, 0
      %p182 = por %p180, %p181
      %p183 = scmp.ne.s32.totalorder %s175, %s177
      %p184 = scmp.eq.s32.totalorder %s37, 1
      %p185 = por %p183, %p184
      %p186 = scmp.ne.s32.totalorder %s177, %s178
      %p187 = scmp.eq.s32.totalorder %s37, 0
      %p188 = por %p186, %p187
      %p189 = scmp.ne.s32.totalorder %s177, %s178
      %p190 = scmp.eq.s32.totalorder %s38, 1
      %p191 = por %p189, %p190
      %p193 = scmp.ne.s32.totalorder %s178, %s192
      %p194 = scmp.eq.s32.totalorder %s38, 0
      %p195 = por %p193, %p194
      %s197 = sadd.s32 %s196, 1
      %p200 = scmp.eq.s32.totalorder %s32, 1
      %p201 = scmp.ne.s32.totalorder %s196, %s198
      %p202 = scmp.eq.s32.totalorder %s32, 0
      %p203 = por %p201, %p202
      %p204 = scmp.ne.s32.totalorder %s196, %s198
      %p205 = scmp.eq.s32.totalorder %s37, 1
      %p206 = por %p204, %p205
      %p207 = scmp.ne.s32.totalorder %s198, %s199
      %p208 = scmp.eq.s32.totalorder %s37, 0
      %p209 = por %p207, %p208
      %p210 = scmp.ne.s32.totalorder %s198, %s199
      %p211 = scmp.eq.s32.totalorder %s38, 1
      %p212 = por %p210, %p211
      %p214 = scmp.ne.s32.totalorder %s199, %s213
      %p215 = scmp.eq.s32.totalorder %s38, 0
      %p216 = por %p214, %p215
      %s218 = sadd.s32 %s217, 1
      %p221 = scmp.eq.s32.totalorder %s32, 1
      %p222 = scmp.ne.s32.totalorder %s217, %s219
      %p223 = scmp.eq.s32.totalorder %s32, 0
      %p224 = por %p222, %p223
      %p225 = scmp.ne.s32.totalorder %s217, %s219
      %p226 = scmp.eq.s32.totalorder %s37, 1
      %p227 = por %p225, %p226
      %p228 = scmp.ne.s32.totalorder %s219, %s220
      %p229 = scmp.eq.s32.totalorder %s37, 0
      %p230 = por %p228, %p229
      %p231 = scmp.ne.s32.totalorder %s219, %s220
      %p232 = scmp.eq.s32.totalorder %s38, 1
      %p233 = por %p231, %p232
      %p235 = scmp.ne.s32.totalorder %s220, %s234
      %p236 = scmp.eq.s32.totalorder %s38, 0
      %p237 = por %p235, %p236
      %s239 = sadd.s32 %s238, 1
      %p242 = scmp.eq.s32.totalorder %s32, 1
      %p243 = scmp.ne.s32.totalorder %s238, %s240
      %p244 = scmp.eq.s32.totalorder %s32, 0
      %p245 = por %p243, %p244
      %p246 = scmp.ne.s32.totalorder %s238, %s240
      %p247 = scmp.eq.s32.totalorder %s37, 1
      %p248 = por %p246, %p247
      %p249 = scmp.ne.s32.totalorder %s240, %s241
      %p250 = scmp.eq.s32.totalorder %s37, 0
      %p251 = por %p249, %p250
      %p252 = scmp.ne.s32.totalorder %s240, %s241
      %p253 = scmp.eq.s32.totalorder %s38, 1
      %p254 = por %p252, %p253
      %p256 = scmp.ne.s32.totalorder %s241, %s255
      %p257 = scmp.eq.s32.totalorder %s38, 0
      %p258 = por %p256, %p257
      %s259 = ssub.s32 %s39, %s58
      %s260 = ssub.s32 %s40, %s54
      %s261 = sor.u32 %s259, %s260
      %p262 = scmp.eq.s32.totalorder %s261, 0
      %s264 = sadd.s32 %s263, 1
      %s265 = scalar_select %p262, %s263, %s264
      %p268 = pneg %p262
      %p269 = scmp.eq.s32.totalorder %s32, 1
      %p270 = por %p268, %p269
      %p271 = scmp.ne.s32.totalorder %s263, %s266
      %p272 = scmp.eq.s32.totalorder %s32, 0
      %p273 = por %p271, %p272
      %p274 = scmp.ne.s32.totalorder %s263, %s266
      %p275 = scmp.eq.s32.totalorder %s37, 1
      %p276 = por %p274, %p275
      %p277 = scmp.ne.s32.totalorder %s266, %s267
      %p278 = scmp.eq.s32.totalorder %s37, 0
      %p279 = por %p277, %p278
      %p280 = scmp.ne.s32.totalorder %s266, %s267
      %p281 = scmp.eq.s32.totalorder %s38, 1
      %p282 = por %p280, %p281
      %p284 = scmp.ne.s32.totalorder %s267, %s283
      %p285 = scmp.eq.s32.totalorder %s38, 0
      %p286 = por %p284, %p285
      %p287 = scmp.le.s32.totalorder 1, %s32
      %p288 = scmp.lt.s32.totalorder %s32, 3
      %p289 = pnand %p287, %p288
      %p290 = pneg %p289
      // Predicated region
      $region9: #{tpu_custom_call.1} parent=5 // pred_check
        _
      $region10: #{tpu_custom_call.1} parent=5 // pred_check_branch
        %292 = sbr.rel (%p289) target = $region12
      $region11: #{tpu_custom_call.1} parent=5 // pred_region
        %s293 = ssub.s32 %s32, 1
        // Predicated region
        $region13: #{tpu_custom_call.1} parent=11 // pred_check
          %p294 = pneg %p188
        $region14: #{tpu_custom_call.1} parent=11 // pred_check_branch
          %296 = sbr.rel (%p294) target = $region16
        $region15: #{tpu_custom_call.1} parent=11 // pred_region
          _
        $region16: #{tpu_custom_call.1} parent=11 // pred_fallthru
          _
        // Predicated region
        $region17: #{tpu_custom_call.1} parent=11 // pred_check
          %p297 = pneg %p209
        $region18: #{tpu_custom_call.1} parent=11 // pred_check_branch
          %299 = sbr.rel (%p297) target = $region20
        $region19: #{tpu_custom_call.1} parent=11 // pred_region
          _
        $region20: #{tpu_custom_call.1} parent=11 // pred_fallthru
          _
        // Predicated region
        $region21: #{tpu_custom_call.1} parent=11 // pred_check
          %p300 = pneg %p230
        $region22: #{tpu_custom_call.1} parent=11 // pred_check_branch
          %302 = sbr.rel (%p300) target = $region24
        $region23: #{tpu_custom_call.1} parent=11 // pred_region
          _
        $region24: #{tpu_custom_call.1} parent=11 // pred_fallthru
          _
        // Predicated region
        $region25: #{tpu_custom_call.1} parent=11 // pred_check
          %p303 = pneg %p251
        $region26: #{tpu_custom_call.1} parent=11 // pred_check_branch
          %305 = sbr.rel (%p303) target = $region28
        $region27: #{tpu_custom_call.1} parent=11 // pred_region
          _
        $region28: #{tpu_custom_call.1} parent=11 // pred_fallthru
          _
      $region12: #{tpu_custom_call.1} parent=5 // pred_fallthru
        _
      %p306 = scmp.lt.s32.totalorder %s32, 2
      // Predicated region
      $region29: #{tpu_custom_call.1} parent=5 // pred_check
        %p307 = pneg %p306
      $region30: #{tpu_custom_call.1} parent=5 // pred_check_branch
        %309 = sbr.rel (%p307) target = $region32
      $region31: #{tpu_custom_call.1} parent=5 // pred_region
        // Predicated region
        $region33: #{tpu_custom_call.1} parent=31 // pred_check
          %p310 = pneg %p75
        $region34: #{tpu_custom_call.1} parent=31 // pred_check_branch
          %312 = sbr.rel (%p310) target = $region36
        $region35: #{tpu_custom_call.1} parent=31 // pred_region
          %s313 = sadd.s32 %s40, %s41
          %p314 = scmp.lt.s32.totalorder %s39, 1
          %s315 = scalar_select %p314, %s39, 1
          %p316 = scmp.lt.s32.totalorder %s313, 0
          %s317 = scalar_select %p316, %s313, 0
          %s318 = smul.addr %s315, 2
          %s319 = sadd.s32 %s317, %s318
          %s320 = smul.addr %s319, 8
          %s321 = scalar_lea.vmem %s2, %s320
          %s322 = sadd.s32 %s40, %s41
        $region36: #{tpu_custom_call.1} parent=31 // pred_fallthru
          _
        // Predicated region
        $region37: #{tpu_custom_call.1} parent=31 // pred_check
          %p323 = pneg %p105
        $region38: #{tpu_custom_call.1} parent=31 // pred_check_branch
          %325 = sbr.rel (%p323) target = $region40
        $region39: #{tpu_custom_call.1} parent=31 // pred_region
          %s326 = sadd.s32 %s40, %s41
          %p327 = scmp.lt.s32.totalorder %s39, 1
          %s328 = scalar_select %p327, %s39, 1
          %p329 = scmp.lt.s32.totalorder %s326, 0
          %s330 = scalar_select %p329, %s326, 0
          %s331 = smul.addr %s328, 2
          %s332 = sadd.s32 %s330, %s331
          %s333 = smul.addr %s332, 8
          %s334 = scalar_lea.vmem %s3, %s333
          %s335 = sadd.s32 %s40, %s41
        $region40: #{tpu_custom_call.1} parent=31 // pred_fallthru
          _
        // Predicated region
        $region41: #{tpu_custom_call.1} parent=31 // pred_check
          %p336 = pneg %p135
        $region42: #{tpu_custom_call.1} parent=31 // pred_check_branch
          %338 = sbr.rel (%p336) target = $region44
        $region43: #{tpu_custom_call.1} parent=31 // pred_region
          %s339 = sadd.s32 %s40, %s41
          %p340 = scmp.lt.s32.totalorder %s39, 1
          %s341 = scalar_select %p340, %s39, 1
          %p342 = scmp.lt.s32.totalorder %s339, 0
          %s343 = scalar_select %p342, %s339, 0
          %s344 = smul.addr %s341, 2
          %s345 = sadd.s32 %s343, %s344
          %s346 = smul.addr %s345, 4
          %s347 = scalar_lea.vmem %s4, %s346
          %s348 = sadd.s32 %s40, %s41
        $region44: #{tpu_custom_call.1} parent=31 // pred_fallthru
          _
        // Predicated region
        $region45: #{tpu_custom_call.1} parent=31 // pred_check
          %p349 = pneg %p161
        $region46: #{tpu_custom_call.1} parent=31 // pred_check_branch
          %351 = sbr.rel (%p349) target = $region48
        $region47: #{tpu_custom_call.1} parent=31 // pred_region
          %p352 = scmp.lt.s32.totalorder %s39, 1
          %s353 = scalar_select %p352, %s39, 1
          %s354 = smul.addr %s353, 16
          %s355 = smul.addr %s354, 8
          %s356 = scalar_lea.vmem %s5, %s355
        $region48: #{tpu_custom_call.1} parent=31 // pred_fallthru
          _
      $region32: #{tpu_custom_call.1} parent=5 // pred_fallthru
        _
      %p357 = scmp.le.s32.totalorder 1, %s32
      %p358 = scmp.lt.s32.totalorder %s32, 3
      %p359 = pnand %p357, %p358
      %p360 = pneg %p359
      // Predicated region
      $region49: #{tpu_custom_call.1} parent=5 // pred_check
        _
      $region50: #{tpu_custom_call.1} parent=5 // pred_check_branch
        %362 = sbr.rel (%p359) target = $region52
      $region51: #{tpu_custom_call.1} parent=5 // pred_region
        %s363 = ssub.s32 %s32, 1
        %s364 = sadd.s32 %s43, %s44
        %p365 = scmp.lt.s32.totalorder %s42, 1
        %s366 = scalar_select %p365, %s42, 1
        %p367 = scmp.lt.s32.totalorder %s364, 0
        %s368 = scalar_select %p367, %s364, 0
        %s369 = smul.addr %s366, 2
        %s370 = sadd.s32 %s368, %s369
        %s371 = smul.addr %s370, 8
        %s372 = scalar_lea.vmem %s2, %s371
        %p373 = pneg %p81
        %p374 = pneg %p78
        %s375 = sadd.s32 %s43, %s44
        %p376 = scmp.lt.s32.totalorder %s42, 1
        %s377 = scalar_select %p376, %s42, 1
        %p378 = scmp.lt.s32.totalorder %s375, 0
        %s379 = scalar_select %p378, %s375, 0
        %s380 = smul.addr %s377, 2
        %s381 = sadd.s32 %s379, %s380
        %s382 = smul.addr %s381, 8
        %s383 = scalar_lea.vmem %s3, %s382
        %p384 = pneg %p111
        %p385 = pneg %p108
        %s386 = sadd.s32 %s43, %s44
        %p387 = scmp.lt.s32.totalorder %s42, 1
        %s388 = scalar_select %p387, %s42, 1
        %p389 = scmp.lt.s32.totalorder %s386, 0
        %s390 = scalar_select %p389, %s386, 0
        %s391 = smul.addr %s388, 2
        %s392 = sadd.s32 %s390, %s391
        %s393 = smul.addr %s392, 4
        %s394 = scalar_lea.vmem %s4, %s393
        %p395 = pneg %p141
        %p396 = pneg %p138
        %p397 = scmp.lt.s32.totalorder %s42, 1
        %s398 = scalar_select %p397, %s42, 1
        %s399 = smul.addr %s398, 16
        %s400 = smul.addr %s399, 8
        %s401 = scalar_lea.vmem %s5, %s400
        %p402 = pneg %p167
        %p403 = pneg %p164
        %p404 = pneg %p188
        %p405 = pneg %p185
        %p406 = pneg %p209
        %p407 = pneg %p206
        %p408 = pneg %p230
        %p409 = pneg %p227
        %p410 = pneg %p251
        %p411 = pneg %p248
        %p412 = pneg %p279
        %p413 = pneg %p276
        %s414 = sand.u32 %s266, 1
        %s415 = scalar_lea.sflag [#allocation7], %s414
        %s416 = sand.u32 %s266, 1
        %s417 = smul.addr %s416, 16
        %s418 = scalar_lea.vmem [#allocation6], %s417
        %s419 = sadd.s32 %s43, %s44
        %p420 = scmp.lt.s32.totalorder %s42, 1
        %s421 = scalar_select %p420, %s42, 1
        %p422 = scmp.lt.s32.totalorder %s419, 0
        %s423 = scalar_select %p422, %s419, 0
        %s424 = smul.addr %s421, 2
        %s425 = sadd.s32 %s423, %s424
        %s426 = smul.addr %s425, 8
        %s427 = scalar_lea.vmem %s2, %s426
        %s428 = sadd.s32 %s43, %s44
        %s429 = sadd.s32 %s43, %s44
        %p430 = scmp.lt.s32.totalorder %s42, 1
        %s431 = scalar_select %p430, %s42, 1
        %p432 = scmp.lt.s32.totalorder %s429, 0
        %s433 = scalar_select %p432, %s429, 0
        %s434 = smul.addr %s431, 2
        %s435 = sadd.s32 %s433, %s434
        %s436 = smul.addr %s435, 8
        %s437 = scalar_lea.vmem %s3, %s436
        %s438 = sadd.s32 %s43, %s44
        %s439 = sadd.s32 %s43, %s44
        %p440 = scmp.lt.s32.totalorder %s42, 1
        %s441 = scalar_select %p440, %s42, 1
        %p442 = scmp.lt.s32.totalorder %s439, 0
        %s443 = scalar_select %p442, %s439, 0
        %s444 = smul.addr %s441, 2
        %s445 = sadd.s32 %s443, %s444
        %s446 = smul.addr %s445, 4
        %s447 = scalar_lea.vmem %s4, %s446
        %s448 = sadd.s32 %s43, %s44
        %p449 = scmp.lt.s32.totalorder %s42, 1
        %s450 = scalar_select %p449, %s42, 1
        %s451 = smul.addr %s450, 16
        %s452 = smul.addr %s451, 8
        %s453 = scalar_lea.vmem %s5, %s452
        %p456 = scmp.eq.s32.totalorder %s44, 0
        // Predicated region
        $region53: #{tpu_custom_call.1} parent=51 // pred_check
          %p457 = pneg %p456
        $region54: #{tpu_custom_call.1} parent=51 // pred_check_branch
          %459 = sbr.rel (%p457) target = $region56
        $region55: #{tpu_custom_call.1} parent=51 // pred_region
          %460 = vst [vmem:[#allocation2] sm:$0xff] 0.0
          %461 = vst [vmem:[#allocation2 + $0x8] sm:$0xff] 0.0
        $region56: #{tpu_custom_call.1} parent=51 // pred_fallthru
          _
        %s462 = sld [smem:[#allocation4 + %s42]]
        %s463 = sld [smem:[#allocation5 + %s42]]
        %s464 = smul.f32 %s462, 0.31830987
        %s465 = smul.f32 %s463, 0.31830987
        %v466 = vld [vmem:[%s427] sm:$0xff]
        %v467 = vld [vmem:[%s427 + $0x8] sm:$0xff]
        %v468 = vld [vmem:[%s437] sm:$0xff]
        %v469 = vld [vmem:[%s437 + $0x8] sm:$0xff]
        %v470 = vpack.c.bf16 %v469, %v468
        %v471 = vld [vmem:[%s447] sm:$0xf]
        %v472 = vld [vmem:[%s447 + $0x4] sm:$0xf]
        %v473 = vunpack.c.l.bf16 %v471
        %v474 = vunpack.c.l.bf16 %v472
        %v475 = vstv %s464
        %v476 = vmul.f32 %v475, %v466
        %v477 = vmul.f32 %v475, %v467
        %v478 = vstv %s463
        %v479 = vmul.f32 %v478, %v473
        %v480 = vmul.f32 %v478, %v474
        %v481 = vadd.f32 %v476, %v479
        %v482 = vadd.f32 %v477, %v480
        %v483 = vstv %s462
        %v484 = vmul.f32 %v483, %v473
        %v485 = vmul.f32 %v483, %v474
        %v486 = vstv %s465
        %v487 = vmul.f32 %v486, %v466
        %v488 = vmul.f32 %v486, %v467
        %v489 = vsub.f32 %v484, %v487
        %v490 = vsub.f32 %v485, %v488
        %v491 = vld [vmem:[%s6] sm:$0xf]
        %v492 = vld [vmem:[%s6 + $0x4] sm:$0xf]
        %v493 = vld [vmem:[%s6 + $0x8] sm:$0xf]
        %v494 = vld [vmem:[%s6 + $0xc] sm:$0xf]
        %v495 = vld [vmem:[%s6 + $0x10] sm:$0xf]
        %v496 = vld [vmem:[%s6 + $0x14] sm:$0xf]
        %v497 = vld [vmem:[%s6 + $0x18] sm:$0xf]
        %v498 = vld [vmem:[%s6 + $0x1c] sm:$0xf]
        %v499 = vld [vmem:[%s6 + $0x20] sm:$0xf]
        %v500 = vld [vmem:[%s6 + $0x24] sm:$0xf]
        %v501 = vld [vmem:[%s6 + $0x28] sm:$0xf]
        %v502 = vld [vmem:[%s6 + $0x2c] sm:$0xf]
        %v503 = vld [vmem:[%s6 + $0x30] sm:$0xf]
        %v504 = vld [vmem:[%s6 + $0x34] sm:$0xf]
        %v505 = vld [vmem:[%s6 + $0x38] sm:$0xf]
        %v506 = vld [vmem:[%s6 + $0x3c] sm:$0xf]
        %v507 = vpack.c.bf16 %v482, %v481
        %v508 = vld [vmem:[%s7] sm:$0xf]
        %v509 = vld [vmem:[%s7 + $0x4] sm:$0xf]
        %v510 = vld [vmem:[%s7 + $0x8] sm:$0xf]
        %v511 = vld [vmem:[%s7 + $0xc] sm:$0xf]
        %v512 = vld [vmem:[%s7 + $0x10] sm:$0xf]
        %v513 = vld [vmem:[%s7 + $0x14] sm:$0xf]
        %v514 = vld [vmem:[%s7 + $0x18] sm:$0xf]
        %v515 = vld [vmem:[%s7 + $0x1c] sm:$0xf]
        %v516 = vld [vmem:[%s7 + $0x20] sm:$0xf]
        %v517 = vld [vmem:[%s7 + $0x24] sm:$0xf]
        %v518 = vld [vmem:[%s7 + $0x28] sm:$0xf]
        %v519 = vld [vmem:[%s7 + $0x2c] sm:$0xf]
        %v520 = vld [vmem:[%s7 + $0x30] sm:$0xf]
        %v521 = vld [vmem:[%s7 + $0x34] sm:$0xf]
        %v522 = vld [vmem:[%s7 + $0x38] sm:$0xf]
        %v523 = vld [vmem:[%s7 + $0x3c] sm:$0xf]
        %v540 = vunpack.c.l.b16 %v508
        %v541 = vunpack.c.l.b16 %v509
        %v542 = vunpack.c.l.b16 %v510
        %v543 = vunpack.c.l.b16 %v511
        %v544 = vunpack.c.l.b16 %v512
        %v545 = vunpack.c.l.b16 %v513
        %v546 = vunpack.c.l.b16 %v514
        %v547 = vunpack.c.l.b16 %v515
        %v548 = vunpack.c.l.b16 %v516
        %v549 = vunpack.c.l.b16 %v517
        %v550 = vunpack.c.l.b16 %v518
        %v551 = vunpack.c.l.b16 %v519
        %v552 = vunpack.c.l.b16 %v520
        %v553 = vunpack.c.l.b16 %v521
        %v554 = vunpack.c.l.b16 %v522
        %v555 = vunpack.c.l.b16 %v523
        %v556 = vpack.c.b16 %v541, %v540
        %v557 = vpack.c.b16 %v543, %v542
        %v558 = vpack.c.b16 %v545, %v544
        %v559 = vpack.c.b16 %v547, %v546
        %v560 = vpack.c.b16 %v549, %v548
        %v561 = vpack.c.b16 %v551, %v550
        %v562 = vpack.c.b16 %v553, %v552
        %v563 = vpack.c.b16 %v555, %v554
        %vm564 = vcmask 130048
        %v566 = vsel %vm564, %v556, 0
        %v569 = vsel %vm564, %v557, 0
        %v572 = vsel %vm564, %v558, 0
        %v575 = vsel %vm564, %v559, 0
        %v578 = vsel %vm564, %v560, 0
        %v581 = vsel %vm564, %v561, 0
        %v584 = vsel %vm564, %v562, 0
        %v587 = vsel %vm564, %v563, 0
        %589 = vmatpush.bf16.msra.mxu0 0
        %590 = vmatpush.bf16.msra.mxu0 0
        %591 = vmatpush.bf16.msra.mxu0 0
        %592 = vmatpush.bf16.msra.mxu0 0
        %593 = vmatpush.bf16.msra.mxu0 0
        %594 = vmatpush.bf16.msra.mxu0 0
        %595 = vmatpush.bf16.msra.mxu0 0
        %596 = vmatpush.bf16.msra.mxu0 %v470
        %597 = vmatmul.bf16.gmra.mxu0 %v566
        %v598 = vpop.f32.mrf.mxu0
        %v599 = vadd.f32 0.0, %v598
        %v600 = vpop.f32.mrf.mxu0
        %v601 = vadd.f32 0.0, %v600
        %602 = vmatmul.bf16.gmra.mxu0 %v569
        %v603 = vpop.f32.mrf.mxu0
        %v604 = vadd.f32 0.0, %v603
        %v605 = vpop.f32.mrf.mxu0
        %v606 = vadd.f32 0.0, %v605
        %607 = vmatmul.bf16.gmra.mxu0 %v572
        %v608 = vpop.f32.mrf.mxu0
        %v609 = vadd.f32 0.0, %v608
        %v610 = vpop.f32.mrf.mxu0
        %v611 = vadd.f32 0.0, %v610
        %612 = vmatmul.bf16.gmra.mxu0 %v575
        %v613 = vpop.f32.mrf.mxu0
        %v614 = vadd.f32 0.0, %v613
        %v615 = vpop.f32.mrf.mxu0
        %v616 = vadd.f32 0.0, %v615
        %617 = vmatmul.bf16.gmra.mxu0 %v578
        %v618 = vpop.f32.mrf.mxu0
        %v619 = vadd.f32 0.0, %v618
        %v620 = vpop.f32.mrf.mxu0
        %v621 = vadd.f32 0.0, %v620
        %622 = vmatmul.bf16.gmra.mxu0 %v581
        %v623 = vpop.f32.mrf.mxu0
        %v624 = vadd.f32 0.0, %v623
        %v625 = vpop.f32.mrf.mxu0
        %v626 = vadd.f32 0.0, %v625
        %627 = vmatmul.bf16.gmra.mxu0 %v584
        %v628 = vpop.f32.mrf.mxu0
        %v629 = vadd.f32 0.0, %v628
        %v630 = vpop.f32.mrf.mxu0
        %v631 = vadd.f32 0.0, %v630
        %632 = vmatmul.bf16.gmra.mxu0 %v587
        %v633 = vpop.f32.mrf.mxu0
        %v634 = vadd.f32 0.0, %v633
        %v635 = vpop.f32.mrf.mxu0
        %v636 = vadd.f32 0.0, %v635
        %637 = vdwg.mxu0
        %v654 = vunpack.c.l.b16 %v491
        %v655 = vunpack.c.l.b16 %v492
        %v656 = vunpack.c.l.b16 %v493
        %v657 = vunpack.c.l.b16 %v494
        %v658 = vunpack.c.l.b16 %v495
        %v659 = vunpack.c.l.b16 %v496
        %v660 = vunpack.c.l.b16 %v497
        %v661 = vunpack.c.l.b16 %v498
        %v662 = vunpack.c.l.b16 %v499
        %v663 = vunpack.c.l.b16 %v500
        %v664 = vunpack.c.l.b16 %v501
        %v665 = vunpack.c.l.b16 %v502
        %v666 = vunpack.c.l.b16 %v503
        %v667 = vunpack.c.l.b16 %v504
        %v668 = vunpack.c.l.b16 %v505
        %v669 = vunpack.c.l.b16 %v506
        %v670 = vpack.c.b16 %v655, %v654
        %v671 = vpack.c.b16 %v657, %v656
        %v672 = vpack.c.b16 %v659, %v658
        %v673 = vpack.c.b16 %v661, %v660
        %v674 = vpack.c.b16 %v663, %v662
        %v675 = vpack.c.b16 %v665, %v664
        %v676 = vpack.c.b16 %v667, %v666
        %v677 = vpack.c.b16 %v669, %v668
        %v679 = vsel %vm564, %v670, 0
        %v682 = vsel %vm564, %v671, 0
        %v685 = vsel %vm564, %v672, 0
        %v688 = vsel %vm564, %v673, 0
        %v691 = vsel %vm564, %v674, 0
        %v694 = vsel %vm564, %v675, 0
        %v697 = vsel %vm564, %v676, 0
        %v700 = vsel %vm564, %v677, 0
        %702 = vmatpush.bf16.msra.mxu0 0
        %703 = vmatpush.bf16.msra.mxu0 0
        %704 = vmatpush.bf16.msra.mxu0 0
        %705 = vmatpush.bf16.msra.mxu0 0
        %706 = vmatpush.bf16.msra.mxu0 0
        %707 = vmatpush.bf16.msra.mxu0 0
        %708 = vmatpush.bf16.msra.mxu0 0
        %709 = vmatpush.bf16.msra.mxu0 %v507
        %710 = vmatmul.bf16.gmra.mxu0 %v679
        %v711 = vpop.f32.mrf.mxu0
        %v712 = vadd.f32 %v599, %v711
        %v713 = vpop.f32.mrf.mxu0
        %v714 = vadd.f32 %v601, %v713
        %715 = vmatmul.bf16.gmra.mxu0 %v682
        %v716 = vpop.f32.mrf.mxu0
        %v717 = vadd.f32 %v604, %v716
        %v718 = vpop.f32.mrf.mxu0
        %v719 = vadd.f32 %v606, %v718
        %720 = vmatmul.bf16.gmra.mxu0 %v685
        %v721 = vpop.f32.mrf.mxu0
        %v722 = vadd.f32 %v609, %v721
        %v723 = vpop.f32.mrf.mxu0
        %v724 = vadd.f32 %v611, %v723
        %725 = vmatmul.bf16.gmra.mxu0 %v688
        %v726 = vpop.f32.mrf.mxu0
        %v727 = vadd.f32 %v614, %v726
        %v728 = vpop.f32.mrf.mxu0
        %v729 = vadd.f32 %v616, %v728
        %730 = vmatmul.bf16.gmra.mxu0 %v691
        %v731 = vpop.f32.mrf.mxu0
        %v732 = vadd.f32 %v619, %v731
        %v733 = vpop.f32.mrf.mxu0
        %v734 = vadd.f32 %v621, %v733
        %735 = vmatmul.bf16.gmra.mxu0 %v694
        %v736 = vpop.f32.mrf.mxu0
        %v737 = vadd.f32 %v624, %v736
        %v738 = vpop.f32.mrf.mxu0
        %v739 = vadd.f32 %v626, %v738
        %740 = vmatmul.bf16.gmra.mxu0 %v697
        %v741 = vpop.f32.mrf.mxu0
        %v742 = vadd.f32 %v629, %v741
        %v743 = vpop.f32.mrf.mxu0
        %v744 = vadd.f32 %v631, %v743
        %745 = vmatmul.bf16.gmra.mxu0 %v700
        %v746 = vpop.f32.mrf.mxu0
        %v747 = vadd.f32 %v634, %v746
        %v748 = vpop.f32.mrf.mxu0
        %v749 = vadd.f32 %v636, %v748
        %750 = vdwg.mxu0
        %v751 = vld [vmem:[%s453] sm:$0xff]
        %v752 = vld [vmem:[%s453 + $0x8] sm:$0xff]
        %v753 = vld [vmem:[%s453 + $0x10] sm:$0xff]
        %v754 = vld [vmem:[%s453 + $0x18] sm:$0xff]
        %v755 = vld [vmem:[%s453 + $0x20] sm:$0xff]
        %v756 = vld [vmem:[%s453 + $0x28] sm:$0xff]
        %v757 = vld [vmem:[%s453 + $0x30] sm:$0xff]
        %v758 = vld [vmem:[%s453 + $0x38] sm:$0xff]
        %v759 = vld [vmem:[%s453 + $0x40] sm:$0xff]
        %v760 = vld [vmem:[%s453 + $0x48] sm:$0xff]
        %v761 = vld [vmem:[%s453 + $0x50] sm:$0xff]
        %v762 = vld [vmem:[%s453 + $0x58] sm:$0xff]
        %v763 = vld [vmem:[%s453 + $0x60] sm:$0xff]
        %v764 = vld [vmem:[%s453 + $0x68] sm:$0xff]
        %v765 = vld [vmem:[%s453 + $0x70] sm:$0xff]
        %v766 = vld [vmem:[%s453 + $0x78] sm:$0xff]
        %768 = vset.pattern.permute.xlu0 0
        %769 = vperm.xlu0 %768, %v751
        %v770 = vpop.permute.xlu0 %769
        %773 = vset.pattern.permute.xlu0 0
        %774 = vperm.xlu0 %773, %v752
        %v775 = vpop.permute.xlu0 %774
        %778 = vset.pattern.permute.xlu0 0
        %779 = vperm.xlu0 %778, %v753
        %v780 = vpop.permute.xlu0 %779
        %783 = vset.pattern.permute.xlu0 0
        %784 = vperm.xlu0 %783, %v754
        %v785 = vpop.permute.xlu0 %784
        %788 = vset.pattern.permute.xlu0 0
        %789 = vperm.xlu0 %788, %v755
        %v790 = vpop.permute.xlu0 %789
        %793 = vset.pattern.permute.xlu0 0
        %794 = vperm.xlu0 %793, %v756
        %v795 = vpop.permute.xlu0 %794
        %798 = vset.pattern.permute.xlu0 0
        %799 = vperm.xlu0 %798, %v757
        %v800 = vpop.permute.xlu0 %799
        %803 = vset.pattern.permute.xlu0 0
        %804 = vperm.xlu0 %803, %v758
        %v805 = vpop.permute.xlu0 %804
        %808 = vset.pattern.permute.xlu0 0
        %809 = vperm.xlu0 %808, %v759
        %v810 = vpop.permute.xlu0 %809
        %813 = vset.pattern.permute.xlu0 0
        %814 = vperm.xlu0 %813, %v760
        %v815 = vpop.permute.xlu0 %814
        %818 = vset.pattern.permute.xlu0 0
        %819 = vperm.xlu0 %818, %v761
        %v820 = vpop.permute.xlu0 %819
        %823 = vset.pattern.permute.xlu0 0
        %824 = vperm.xlu0 %823, %v762
        %v825 = vpop.permute.xlu0 %824
        %828 = vset.pattern.permute.xlu0 0
        %829 = vperm.xlu0 %828, %v763
        %v830 = vpop.permute.xlu0 %829
        %833 = vset.pattern.permute.xlu0 0
        %834 = vperm.xlu0 %833, %v764
        %v835 = vpop.permute.xlu0 %834
        %838 = vset.pattern.permute.xlu0 0
        %839 = vperm.xlu0 %838, %v765
        %v840 = vpop.permute.xlu0 %839
        %843 = vset.pattern.permute.xlu0 0
        %844 = vperm.xlu0 %843, %v766
        %v845 = vpop.permute.xlu0 %844
        %v847 = vadd.f32 %v712, %v770
        %v848 = vadd.f32 %v714, %v775
        %v849 = vadd.f32 %v717, %v780
        %v850 = vadd.f32 %v719, %v785
        %v851 = vadd.f32 %v722, %v790
        %v852 = vadd.f32 %v724, %v795
        %v853 = vadd.f32 %v727, %v800
        %v854 = vadd.f32 %v729, %v805
        %v855 = vadd.f32 %v732, %v810
        %v856 = vadd.f32 %v734, %v815
        %v857 = vadd.f32 %v737, %v820
        %v858 = vadd.f32 %v739, %v825
        %v859 = vadd.f32 %v742, %v830
        %v860 = vadd.f32 %v744, %v835
        %v861 = vadd.f32 %v747, %v840
        %v862 = vadd.f32 %v749, %v845
        %v863 = vpack.c.bf16 %v847, %v847
        %v864 = vpack.c.bf16 %v848, %v848
        %v865 = vpack.c.bf16 %v849, %v849
        %v866 = vpack.c.bf16 %v850, %v850
        %v867 = vpack.c.bf16 %v851, %v851
        %v868 = vpack.c.bf16 %v852, %v852
        %v869 = vpack.c.bf16 %v853, %v853
        %v870 = vpack.c.bf16 %v854, %v854
        %v871 = vpack.c.bf16 %v855, %v855
        %v872 = vpack.c.bf16 %v856, %v856
        %v873 = vpack.c.bf16 %v857, %v857
        %v874 = vpack.c.bf16 %v858, %v858
        %v875 = vpack.c.bf16 %v859, %v859
        %v876 = vpack.c.bf16 %v860, %v860
        %v877 = vpack.c.bf16 %v861, %v861
        %v878 = vpack.c.bf16 %v862, %v862
        %v879 = vxor.u32 %v863, 2147516416
        %v880 = vxor.u32 %v864, 2147516416
        %v881 = vxor.u32 %v865, 2147516416
        %v882 = vxor.u32 %v866, 2147516416
        %v883 = vxor.u32 %v867, 2147516416
        %v884 = vxor.u32 %v868, 2147516416
        %v885 = vxor.u32 %v869, 2147516416
        %v886 = vxor.u32 %v870, 2147516416
        %v887 = vxor.u32 %v871, 2147516416
        %v888 = vxor.u32 %v872, 2147516416
        %v889 = vxor.u32 %v873, 2147516416
        %v890 = vxor.u32 %v874, 2147516416
        %v891 = vxor.u32 %v875, 2147516416
        %v892 = vxor.u32 %v876, 2147516416
        %v893 = vxor.u32 %v877, 2147516416
        %v894 = vxor.u32 %v878, 2147516416
        %v895 = vunpack.c.l.bf16 %v879
        %v896 = vunpack.c.l.bf16 %v880
        %v897 = vunpack.c.l.bf16 %v881
        %v898 = vunpack.c.l.bf16 %v882
        %v899 = vunpack.c.l.bf16 %v883
        %v900 = vunpack.c.l.bf16 %v884
        %v901 = vunpack.c.l.bf16 %v885
        %v902 = vunpack.c.l.bf16 %v886
        %v903 = vunpack.c.l.bf16 %v887
        %v904 = vunpack.c.l.bf16 %v888
        %v905 = vunpack.c.l.bf16 %v889
        %v906 = vunpack.c.l.bf16 %v890
        %v907 = vunpack.c.l.bf16 %v891
        %v908 = vunpack.c.l.bf16 %v892
        %v909 = vunpack.c.l.bf16 %v893
        %v910 = vunpack.c.l.bf16 %v894
        %v911 = vmul.f32 %v895, 1.442695
        %v912 = vpow.pop %v911
        %v913 = vmul.f32 %v896, 1.442695
        %v914 = vpow.pop %v913
        %v915 = vmul.f32 %v897, 1.442695
        %v916 = vpow.pop %v915
        %v917 = vmul.f32 %v898, 1.442695
        %v918 = vpow.pop %v917
        %v919 = vmul.f32 %v899, 1.442695
        %v920 = vpow.pop %v919
        %v921 = vmul.f32 %v900, 1.442695
        %v922 = vpow.pop %v921
        %v923 = vmul.f32 %v901, 1.442695
        %v924 = vpow.pop %v923
        %v925 = vmul.f32 %v902, 1.442695
        %v926 = vpow.pop %v925
        %v927 = vmul.f32 %v903, 1.442695
        %v928 = vpow.pop %v927
        %v929 = vmul.f32 %v904, 1.442695
        %v930 = vpow.pop %v929
        %v931 = vmul.f32 %v905, 1.442695
        %v932 = vpow.pop %v931
        %v933 = vmul.f32 %v906, 1.442695
        %v934 = vpow.pop %v933
        %v935 = vmul.f32 %v907, 1.442695
        %v936 = vpow.pop %v935
        %v937 = vmul.f32 %v908, 1.442695
        %v938 = vpow.pop %v937
        %v939 = vmul.f32 %v909, 1.442695
        %v940 = vpow.pop %v939
        %v941 = vmul.f32 %v910, 1.442695
        %v942 = vpow.pop %v941
        %v943 = vpack.c.bf16 %v912, %v912
        %v944 = vpack.c.bf16 %v914, %v914
        %v945 = vpack.c.bf16 %v916, %v916
        %v946 = vpack.c.bf16 %v918, %v918
        %v947 = vpack.c.bf16 %v920, %v920
        %v948 = vpack.c.bf16 %v922, %v922
        %v949 = vpack.c.bf16 %v924, %v924
        %v950 = vpack.c.bf16 %v926, %v926
        %v951 = vpack.c.bf16 %v928, %v928
        %v952 = vpack.c.bf16 %v930, %v930
        %v953 = vpack.c.bf16 %v932, %v932
        %v954 = vpack.c.bf16 %v934, %v934
        %v955 = vpack.c.bf16 %v936, %v936
        %v956 = vpack.c.bf16 %v938, %v938
        %v957 = vpack.c.bf16 %v940, %v940
        %v958 = vpack.c.bf16 %v942, %v942
        %v959 = vunpack.c.l.bf16 %v943
        %v960 = vunpack.c.l.bf16 %v944
        %v961 = vunpack.c.l.bf16 %v945
        %v962 = vunpack.c.l.bf16 %v946
        %v963 = vunpack.c.l.bf16 %v947
        %v964 = vunpack.c.l.bf16 %v948
        %v965 = vunpack.c.l.bf16 %v949
        %v966 = vunpack.c.l.bf16 %v950
        %v967 = vunpack.c.l.bf16 %v951
        %v968 = vunpack.c.l.bf16 %v952
        %v969 = vunpack.c.l.bf16 %v953
        %v970 = vunpack.c.l.bf16 %v954
        %v971 = vunpack.c.l.bf16 %v955
        %v972 = vunpack.c.l.bf16 %v956
        %v973 = vunpack.c.l.bf16 %v957
        %v974 = vunpack.c.l.bf16 %v958
        %v975 = vadd.f32 %v959, 1.0
        %v976 = vadd.f32 %v960, 1.0
        %v977 = vadd.f32 %v961, 1.0
        %v978 = vadd.f32 %v962, 1.0
        %v979 = vadd.f32 %v963, 1.0
        %v980 = vadd.f32 %v964, 1.0
        %v981 = vadd.f32 %v965, 1.0
        %v982 = vadd.f32 %v966, 1.0
        %v983 = vadd.f32 %v967, 1.0
        %v984 = vadd.f32 %v968, 1.0
        %v985 = vadd.f32 %v969, 1.0
        %v986 = vadd.f32 %v970, 1.0
        %v987 = vadd.f32 %v971, 1.0
        %v988 = vadd.f32 %v972, 1.0
        %v989 = vadd.f32 %v973, 1.0
        %v990 = vadd.f32 %v974, 1.0
        %v991 = vpack.c.bf16 %v975, %v975
        %v992 = vpack.c.bf16 %v976, %v976
        %v993 = vpack.c.bf16 %v977, %v977
        %v994 = vpack.c.bf16 %v978, %v978
        %v995 = vpack.c.bf16 %v979, %v979
        %v996 = vpack.c.bf16 %v980, %v980
        %v997 = vpack.c.bf16 %v981, %v981
        %v998 = vpack.c.bf16 %v982, %v982
        %v999 = vpack.c.bf16 %v983, %v983
        %v1000 = vpack.c.bf16 %v984, %v984
        %v1001 = vpack.c.bf16 %v985, %v985
        %v1002 = vpack.c.bf16 %v986, %v986
        %v1003 = vpack.c.bf16 %v987, %v987
        %v1004 = vpack.c.bf16 %v988, %v988
        %v1005 = vpack.c.bf16 %v989, %v989
        %v1006 = vpack.c.bf16 %v990, %v990
        %v1007 = vunpack.c.h.bf16 1065369472
        %v1008 = vunpack.c.l.bf16 1065369472
        %v1009 = vunpack.c.h.bf16 %v991
        %v1010 = vunpack.c.l.bf16 %v991
        %v1011 = vrcp.pop %v1009
        %v1012 = vmul.f32 %v1007, %v1011
        %v1013 = vrcp.pop %v1010
        %v1014 = vmul.f32 %v1008, %v1013
        %v1015 = vpack.c.bf16 %v1012, %v1014
        %v1016 = vunpack.c.h.bf16 %v992
        %v1017 = vunpack.c.l.bf16 %v992
        %v1018 = vrcp.pop %v1016
        %v1019 = vmul.f32 %v1007, %v1018
        %v1020 = vrcp.pop %v1017
        %v1021 = vmul.f32 %v1008, %v1020
        %v1022 = vpack.c.bf16 %v1019, %v1021
        %v1023 = vunpack.c.h.bf16 %v993
        %v1024 = vunpack.c.l.bf16 %v993
        %v1025 = vrcp.pop %v1023
        %v1026 = vmul.f32 %v1007, %v1025
        %v1027 = vrcp.pop %v1024
        %v1028 = vmul.f32 %v1008, %v1027
        %v1029 = vpack.c.bf16 %v1026, %v1028
        %v1030 = vunpack.c.h.bf16 %v994
        %v1031 = vunpack.c.l.bf16 %v994
        %v1032 = vrcp.pop %v1030
        %v1033 = vmul.f32 %v1007, %v1032
        %v1034 = vrcp.pop %v1031
        %v1035 = vmul.f32 %v1008, %v1034
        %v1036 = vpack.c.bf16 %v1033, %v1035
        %v1037 = vunpack.c.h.bf16 %v995
        %v1038 = vunpack.c.l.bf16 %v995
        %v1039 = vrcp.pop %v1037
        %v1040 = vmul.f32 %v1007, %v1039
        %v1041 = vrcp.pop %v1038
        %v1042 = vmul.f32 %v1008, %v1041
        %v1043 = vpack.c.bf16 %v1040, %v1042
        %v1044 = vunpack.c.h.bf16 %v996
        %v1045 = vunpack.c.l.bf16 %v996
        %v1046 = vrcp.pop %v1044
        %v1047 = vmul.f32 %v1007, %v1046
        %v1048 = vrcp.pop %v1045
        %v1049 = vmul.f32 %v1008, %v1048
        %v1050 = vpack.c.bf16 %v1047, %v1049
        %v1051 = vunpack.c.h.bf16 %v997
        %v1052 = vunpack.c.l.bf16 %v997
        %v1053 = vrcp.pop %v1051
        %v1054 = vmul.f32 %v1007, %v1053
        %v1055 = vrcp.pop %v1052
        %v1056 = vmul.f32 %v1008, %v1055
        %v1057 = vpack.c.bf16 %v1054, %v1056
        %v1058 = vunpack.c.h.bf16 %v998
        %v1059 = vunpack.c.l.bf16 %v998
        %v1060 = vrcp.pop %v1058
        %v1061 = vmul.f32 %v1007, %v1060
        %v1062 = vrcp.pop %v1059
        %v1063 = vmul.f32 %v1008, %v1062
        %v1064 = vpack.c.bf16 %v1061, %v1063
        %v1065 = vunpack.c.h.bf16 %v999
        %v1066 = vunpack.c.l.bf16 %v999
        %v1067 = vrcp.pop %v1065
        %v1068 = vmul.f32 %v1007, %v1067
        %v1069 = vrcp.pop %v1066
        %v1070 = vmul.f32 %v1008, %v1069
        %v1071 = vpack.c.bf16 %v1068, %v1070
        %v1072 = vunpack.c.h.bf16 %v1000
        %v1073 = vunpack.c.l.bf16 %v1000
        %v1074 = vrcp.pop %v1072
        %v1075 = vmul.f32 %v1007, %v1074
        %v1076 = vrcp.pop %v1073
        %v1077 = vmul.f32 %v1008, %v1076
        %v1078 = vpack.c.bf16 %v1075, %v1077
        %v1079 = vunpack.c.h.bf16 %v1001
        %v1080 = vunpack.c.l.bf16 %v1001
        %v1081 = vrcp.pop %v1079
        %v1082 = vmul.f32 %v1007, %v1081
        %v1083 = vrcp.pop %v1080
        %v1084 = vmul.f32 %v1008, %v1083
        %v1085 = vpack.c.bf16 %v1082, %v1084
        %v1086 = vunpack.c.h.bf16 %v1002
        %v1087 = vunpack.c.l.bf16 %v1002
        %v1088 = vrcp.pop %v1086
        %v1089 = vmul.f32 %v1007, %v1088
        %v1090 = vrcp.pop %v1087
        %v1091 = vmul.f32 %v1008, %v1090
        %v1092 = vpack.c.bf16 %v1089, %v1091
        %v1093 = vunpack.c.h.bf16 %v1003
        %v1094 = vunpack.c.l.bf16 %v1003
        %v1095 = vrcp.pop %v1093
        %v1096 = vmul.f32 %v1007, %v1095
        %v1097 = vrcp.pop %v1094
        %v1098 = vmul.f32 %v1008, %v1097
        %v1099 = vpack.c.bf16 %v1096, %v1098
        %v1100 = vunpack.c.h.bf16 %v1004
        %v1101 = vunpack.c.l.bf16 %v1004
        %v1102 = vrcp.pop %v1100
        %v1103 = vmul.f32 %v1007, %v1102
        %v1104 = vrcp.pop %v1101
        %v1105 = vmul.f32 %v1008, %v1104
        %v1106 = vpack.c.bf16 %v1103, %v1105
        %v1107 = vunpack.c.h.bf16 %v1005
        %v1108 = vunpack.c.l.bf16 %v1005
        %v1109 = vrcp.pop %v1107
        %v1110 = vmul.f32 %v1007, %v1109
        %v1111 = vrcp.pop %v1108
        %v1112 = vmul.f32 %v1008, %v1111
        %v1113 = vpack.c.bf16 %v1110, %v1112
        %v1114 = vunpack.c.h.bf16 %v1006
        %v1115 = vunpack.c.l.bf16 %v1006
        %v1116 = vrcp.pop %v1114
        %v1117 = vmul.f32 %v1007, %v1116
        %v1118 = vrcp.pop %v1115
        %v1119 = vmul.f32 %v1008, %v1118
        %v1120 = vpack.c.bf16 %v1117, %v1119
        %v1121 = vunpack.c.l.bf16 %v863
        %v1122 = vunpack.c.l.bf16 %v864
        %v1123 = vunpack.c.l.bf16 %v865
        %v1124 = vunpack.c.l.bf16 %v866
        %v1125 = vunpack.c.l.bf16 %v867
        %v1126 = vunpack.c.l.bf16 %v868
        %v1127 = vunpack.c.l.bf16 %v869
        %v1128 = vunpack.c.l.bf16 %v870
        %v1129 = vunpack.c.l.bf16 %v871
        %v1130 = vunpack.c.l.bf16 %v872
        %v1131 = vunpack.c.l.bf16 %v873
        %v1132 = vunpack.c.l.bf16 %v874
        %v1133 = vunpack.c.l.bf16 %v875
        %v1134 = vunpack.c.l.bf16 %v876
        %v1135 = vunpack.c.l.bf16 %v877
        %v1136 = vunpack.c.l.bf16 %v878
        %v1137 = vunpack.c.l.bf16 %v1015
        %v1138 = vunpack.c.l.bf16 %v1022
        %v1139 = vunpack.c.l.bf16 %v1029
        %v1140 = vunpack.c.l.bf16 %v1036
        %v1141 = vunpack.c.l.bf16 %v1043
        %v1142 = vunpack.c.l.bf16 %v1050
        %v1143 = vunpack.c.l.bf16 %v1057
        %v1144 = vunpack.c.l.bf16 %v1064
        %v1145 = vunpack.c.l.bf16 %v1071
        %v1146 = vunpack.c.l.bf16 %v1078
        %v1147 = vunpack.c.l.bf16 %v1085
        %v1148 = vunpack.c.l.bf16 %v1092
        %v1149 = vunpack.c.l.bf16 %v1099
        %v1150 = vunpack.c.l.bf16 %v1106
        %v1151 = vunpack.c.l.bf16 %v1113
        %v1152 = vunpack.c.l.bf16 %v1120
        %v1153 = vmul.f32 %v1121, %v1137
        %v1154 = vmul.f32 %v1122, %v1138
        %v1155 = vmul.f32 %v1123, %v1139
        %v1156 = vmul.f32 %v1124, %v1140
        %v1157 = vmul.f32 %v1125, %v1141
        %v1158 = vmul.f32 %v1126, %v1142
        %v1159 = vmul.f32 %v1127, %v1143
        %v1160 = vmul.f32 %v1128, %v1144
        %v1161 = vmul.f32 %v1129, %v1145
        %v1162 = vmul.f32 %v1130, %v1146
        %v1163 = vmul.f32 %v1131, %v1147
        %v1164 = vmul.f32 %v1132, %v1148
        %v1165 = vmul.f32 %v1133, %v1149
        %v1166 = vmul.f32 %v1134, %v1150
        %v1167 = vmul.f32 %v1135, %v1151
        %v1168 = vmul.f32 %v1136, %v1152
        %v1169 = vpack.c.bf16 %v1154, %v1153
        %v1170 = vpack.c.bf16 %v1156, %v1155
        %v1171 = vpack.c.bf16 %v1158, %v1157
        %v1172 = vpack.c.bf16 %v1160, %v1159
        %v1173 = vpack.c.bf16 %v1162, %v1161
        %v1174 = vpack.c.bf16 %v1164, %v1163
        %v1175 = vpack.c.bf16 %v1166, %v1165
        %v1176 = vpack.c.bf16 %v1168, %v1167
        %v1177 = vld [vmem:[%s8] sm:$0xf]
        %v1178 = vld [vmem:[%s8 + $0x4] sm:$0xf]
        %v1179 = vld [vmem:[%s9] sm:$0xff]
        %v1180 = vld [vmem:[%s9 + $0x8] sm:$0xff]
        %1182 = vset.pattern.permute.xlu0 0
        %1183 = vperm.xlu0 %1182, %v1179
        %v1184 = vpop.permute.xlu0 %1183
        %1187 = vset.pattern.permute.xlu0 0
        %1188 = vperm.xlu0 %1187, %v1180
        %v1189 = vpop.permute.xlu0 %1188
        %v1193 = vunpack.c.l.b16 %v1177
        %v1194 = vunpack.c.l.b16 %v1178
        %v1195 = vpack.c.b16 %v1194, %v1193
        %1197 = vmatpush.bf16.msra.mxu0 %v1176
        %1198 = vmatpush.bf16.msra.mxu0 %v1175
        %1199 = vmatpush.bf16.msra.mxu0 %v1174
        %1200 = vmatpush.bf16.msra.mxu0 %v1173
        %1201 = vmatpush.bf16.msra.mxu0 %v1172
        %1202 = vmatpush.bf16.msra.mxu0 %v1171
        %1203 = vmatpush.bf16.msra.mxu0 %v1170
        %1204 = vmatpush.bf16.msra.mxu0 %v1169
        %1205 = vmatmul.bf16.gmra.mxu0 %v1195
        %v1206 = vpop.f32.mrf.mxu0
        %v1207 = vadd.f32 %v1184, %v1206
        %v1208 = vpop.f32.mrf.mxu0
        %v1209 = vadd.f32 %v1189, %v1208
        %1210 = vdwg.mxu0
        %v1211 = vsub.f32 %v1207, %v489
        %v1212 = vsub.f32 %v1209, %v490
        %v1213 = vmul.f32 %v1211, %v1211
        %v1214 = vmul.f32 %v1212, %v1212
        %s1215 = sadd.s32 %s43, %s44
        %s1216 = smul.u32 %s1215, 128
        %v1217 = vlaneseq
        %v1218 = vand.u32 %v1217, 127
        %v1219 = vstv %s1216
        %v1220 = vadd.s32 %v1219, %v1218
        %vm1221 = vcmp.lt.s32.totalorder %v1220, 16
        %v1222 = vsel %vm1221, %v1213, 0.0
        %v1223 = vsel %vm1221, %v1214, 0.0
        %v1224 = vld [vmem:[#allocation2] sm:$0xff]
        %v1225 = vld [vmem:[#allocation2 + $0x8] sm:$0xff]
        %v1226 = vadd.f32 %v1224, %v1222
        %v1227 = vadd.f32 %v1225, %v1223
        %1228 = vst [vmem:[#allocation2] sm:$0xff] %v1226
        %1229 = vst [vmem:[#allocation2 + $0x8] sm:$0xff] %v1227
        // Predicated region
        $region57: #{tpu_custom_call.1} parent=51 // pred_check
          %p1230 = pneg %p456
        $region58: #{tpu_custom_call.1} parent=51 // pred_check_branch
          %1232 = sbr.rel (%p1230) target = $region60
        $region59: #{tpu_custom_call.1} parent=51 // pred_region
          %v1233 = vld [vmem:[#allocation2] sm:$0xff]
          %v1234 = vld [vmem:[#allocation2 + $0x8] sm:$0xff]
          %1235 = vadd.xlane.f32.xlu0 %v1233
          %v1236 = vpop.xlane.xlu0 %1235
          %1237 = vadd.xlane.f32.xlu0 %v1234
          %v1238 = vpop.xlane.xlu0 %1237
          %1239 = vst [vmem:[%s418] sm:$0xff] %v1236
          %1240 = vst [vmem:[%s418 + $0x8] sm:$0xff] %v1238
        $region60: #{tpu_custom_call.1} parent=51 // pred_fallthru
          _
        %s1241 = sand.u32 %s266, 1
        %s1242 = scalar_lea.sflag [#allocation7], %s1241
        %s1243 = sand.u32 %s266, 1
        %s1244 = smul.addr %s1243, 16
        %s1245 = scalar_lea.vmem [#allocation6], %s1244
        // Predicated region
        $region61: #{tpu_custom_call.1} parent=51 // pred_check
          %p1246 = pneg %p276
        $region62: #{tpu_custom_call.1} parent=51 // pred_check_branch
          %1248 = sbr.rel (%p1246) target = $region64
        $region63: #{tpu_custom_call.1} parent=51 // pred_region
          %1250 = vsyncadd %s1242, 0
          %s1251 = smul.addr %s43, 2
          %s1252 = smul.addr %s42, 2
          %s1253 = sadd.s32 %s1251, %s1252
          %s1254 = smul.addr %s1253, 8
          %s1255 = scalar_lea.hbm %s10, %s1254
          %s1256 = sshll.u32 %s1245, 4
          %s1257 = int_to_ptr.vmem [resolvable:$true] %s1256
          %s1258 = sshll.u32 %s1255, 4
          %s1259 = int_to_ptr.hbm [resolvable:$true] %s1258
          %1264 = dma.vmem_to_hbm [thread:$0]  %s1257, 256, %s1259, %s1242, 128, 128, 8
        $region64: #{tpu_custom_call.1} parent=51 // pred_fallthru
          _
      $region52: #{tpu_custom_call.1} parent=5 // pred_fallthru
        _
      %p1265 = scmp.le.s32.totalorder 2, %s32
      // Predicated region
      $region65: #{tpu_custom_call.1} parent=5 // pred_check
        %p1266 = pneg %p1265
      $region66: #{tpu_custom_call.1} parent=5 // pred_check_branch
        %1268 = sbr.rel (%p1266) target = $region68
      $region67: #{tpu_custom_call.1} parent=5 // pred_region
        %s1269 = ssub.s32 %s32, 2
        // Predicated region
        $region69: #{tpu_custom_call.1} parent=67 // pred_check
          %p1270 = pneg %p282
        $region70: #{tpu_custom_call.1} parent=67 // pred_check_branch
          %1272 = sbr.rel (%p1270) target = $region72
        $region71: #{tpu_custom_call.1} parent=67 // pred_region
          %s1273 = sand.u32 %s267, 1
          %s1274 = scalar_lea.sflag [#allocation7], %s1273
          %s1275 = sand.u32 %s267, 1
          %s1276 = smul.addr %s1275, 16
          %s1277 = scalar_lea.vmem [#allocation6], %s1276
          %1279 = dma.done %s1274, 256
        $region72: #{tpu_custom_call.1} parent=67 // pred_fallthru
          _
      $region68: #{tpu_custom_call.1} parent=5 // pred_fallthru
        _
    $region6: #{tpu_custom_call.1} parent=1 // loop_footer
      %s36 = sadd.s32 1, %s32
    $region7: #{tpu_custom_call.1} parent=1 // loop_footer_branch
      %31 = sbr.rel target = $region3
    $region8: #{tpu_custom_call.1} parent=1 // loop_exit
      _
    %1280 = vsyncpa [#allocation7], 1
    %s1281 = scalar_lea.sflag [#allocation7], 1
    %1282 = vsyncpa %s1281, 1

</llo_original>
